<compile_context>
chip_gen: v6e
topology: v6e:2x2x1
jax: 0.10.0
libtpu: 0.0.40
codegen_flags: <defaults>
</compile_context>

<pallas_src>
import jax
import jax.numpy as jnp
from jax.experimental import pallas as pl
from jax.experimental.pallas import tpu as pltpu

INPUT_SIZE = 784
HIDDEN_SIZE = 128
NUM_CLASSES = 10

N_PAD = 128   # fc2 weight lanes padded 10 -> 128 for a clean MXU tile
MAX_TB = 2048
MIN_TB = 128


def _round_up(n, m):
    return (n + m - 1) // m * m


def _pick_tb(batch):
    """Batch-tile size: big tiles for throughput, but >=4 grid steps when the
    batch allows it (pipeline overlap + v7x two-TensorCore sharding)."""
    if batch <= MIN_TB:
        # Tiny batch: one ragged block, rounded to a 16-row sublane tile.
        return _round_up(max(batch, 1), 16)
    tb = _round_up(pl.cdiv(batch, 4), 16)
    return max(MIN_TB, min(MAX_TB, tb))


def _mlp_kernel(x_ref, w1_ref, b1_ref, w2_ref, b2_ref, o_ref):
    # Cast the f32 x tile to bf16 in-kernel (VPU cast hidden under the DMA).
    x = x_ref[...].astype(jnp.bfloat16)
    # fc1 on the MXU: bf16 operands, f32 accumulate.
    h = jnp.dot(x, w1_ref[...], preferred_element_type=jnp.float32)
    # Bias + ReLU on the VPU in f32 (safe on v5e's f32-only VPU).
    h = jnp.maximum(h + b1_ref[...], 0.0)
    # fc2 on the MXU (N padded to 128 lanes), f32 accumulate.
    out = jnp.dot(h.astype(jnp.bfloat16), w2_ref[...],
                  preferred_element_type=jnp.float32)
    out = out + b2_ref[...]
    # Store only the 10 real logit lanes (masked vst, hidden under the x DMA).
    o_ref[...] = out[:, :NUM_CLASSES].astype(o_ref.dtype)


def prepare_params(w1, b1, w2, b2):
    """One-time weight prep (bf16 cast + fc2 lane pad) hoisted off the hot path."""
    w1_p = w1.astype(jnp.bfloat16)                               # (784, 128)
    b1_p = b1.reshape(1, HIDDEN_SIZE).astype(jnp.float32)        # (1, 128)
    w2_p = jnp.pad(w2.astype(jnp.bfloat16),
                   ((0, 0), (0, N_PAD - NUM_CLASSES)))           # (128, 128)
    b2_p = jnp.pad(b2.reshape(1, NUM_CLASSES).astype(jnp.float32),
                   ((0, 0), (0, N_PAD - NUM_CLASSES)))           # (1, 128)
    return w1_p, b1_p, w2_p, b2_p


@jax.jit
def simple_mlp_forward(x, w1_p, b1_p, w2_p, b2_p):
    """x: (B, ...) flattened to (B, 784) f32. Returns (B, 10) float32 logits."""
    B = x.shape[0]
    x2d = x.reshape(B, -1)                      # view-like reshape, stays f32

    TB = _pick_tb(B)
    grid = (pl.cdiv(B, TB),)

    flops = 2 * B * (INPUT_SIZE * HIDDEN_SIZE + HIDDEN_SIZE * N_PAD)
    bytes_accessed = (B * INPUT_SIZE * 4                # x read (f32, no copy)
                      + INPUT_SIZE * HIDDEN_SIZE * 2    # w1 (bf16, once)
                      + HIDDEN_SIZE * N_PAD * 2         # w2 (bf16, once)
                      + HIDDEN_SIZE * 4 + N_PAD * 4     # biases
                      + B * NUM_CLASSES * 4)            # logits out

    return pl.pallas_call(
        _mlp_kernel,
        out_shape=jax.ShapeDtypeStruct((B, NUM_CLASSES), jnp.float32),
        grid=grid,
        in_specs=[
            # x tile: last dim = full array dim (784) -> legal, lane padding
            # handled by Mosaic in VMEM; pipelined over the batch grid.
            pl.BlockSpec((TB, INPUT_SIZE), lambda i: (i, 0)),
            # Weights/biases: constant index_map -> VMEM-resident across steps.
            pl.BlockSpec((INPUT_SIZE, HIDDEN_SIZE), lambda i: (0, 0)),
            pl.BlockSpec((1, HIDDEN_SIZE), lambda i: (0, 0)),
            pl.BlockSpec((HIDDEN_SIZE, N_PAD), lambda i: (0, 0)),
            pl.BlockSpec((1, N_PAD), lambda i: (0, 0)),
        ],
        # Output block last dim = full array dim (10) -> no 128-lane pad/slice.
        out_specs=pl.BlockSpec((TB, NUM_CLASSES), lambda i: (i, 0)),
        compiler_params=pltpu.CompilerParams(
            dimension_semantics=("parallel",),
            # Cover double-buffered f32 x tiles at TB=2048 (~12.8 MiB total)
            # even on v5e, whose scoped-VMEM default is only 16 MiB.
            vmem_limit_bytes=32 * 1024 * 1024,
        ),
        cost_estimate=pl.CostEstimate(
            flops=flops, transcendentals=0, bytes_accessed=bytes_accessed),
    )(x2d, w1_p, b1_p, w2_p, b2_p)


def init_params(key, input_size=INPUT_SIZE, hidden_size=HIDDEN_SIZE,
                num_classes=NUM_CLASSES):
    """Deterministic init mimicking nn.Linear's uniform(-1/sqrt(fan_in), ...)."""
    k1, k2, k3, k4 = jax.random.split(key, 4)
    bound1 = 1.0 / (input_size ** 0.5)
    bound2 = 1.0 / (hidden_size ** 0.5)
    # Stored (in, out) so the kernel does x @ W (PyTorch stores (out, in)).
    w1 = jax.random.uniform(k1, (input_size, hidden_size), jnp.float32,
                            -bound1, bound1)
    b1 = jax.random.uniform(k2, (hidden_size,), jnp.float32, -bound1, bound1)
    w2 = jax.random.uniform(k3, (hidden_size, num_classes), jnp.float32,
                            -bound2, bound2)
    b2 = jax.random.uniform(k4, (num_classes,), jnp.float32, -bound2, bound2)
    return w1, b1, w2, b2


if __name__ == "__main__":
    key = jax.random.PRNGKey(0)
    k_params, k_x = jax.random.split(key)

    batch = 2
    w1, b1, w2, b2 = init_params(k_params)
    w1_p, b1_p, w2_p, b2_p = prepare_params(w1, b1, w2, b2)

    # MNIST-like input: (B, 1, 28, 28); wrapper flattens like x.view(B, -1).
    x = jax.random.normal(k_x, (batch, 1, 28, 28), dtype=jnp.float32)

    out = simple_mlp_forward(x, w1_p, b1_p, w2_p, b2_p)
    jax.block_until_ready(out)

    # Sanity check vs plain-JAX f32 reference (bf16 MXU operands -> looser tol).
    x2d = x.reshape(batch, -1)
    ref = jnp.maximum(x2d @ w1 + b1, 0.0) @ w2 + b2
    assert out.shape == (batch, NUM_CLASSES)
    assert jnp.allclose(out, ref, atol=2e-2, rtol=2e-2), (
        float(jnp.max(jnp.abs(out - ref))))

    print("KERNEL_OK")
</pallas_src>

<mosaic_0001>
module attributes {stable_mosaic.version = 11 : i64} {
  func.func @_mlp_kernel(%arg0: i32, %arg1: memref<16x784xf32, #tpu.memory_space<vmem>>, %arg2: memref<784x128xbf16, #tpu.memory_space<vmem>>, %arg3: memref<1x128xf32, #tpu.memory_space<vmem>>, %arg4: memref<128x128xbf16, #tpu.memory_space<vmem>>, %arg5: memref<1x128xf32, #tpu.memory_space<vmem>>, %arg6: memref<16x10xf32, #tpu.memory_space<vmem>>) attributes {dimension_semantics = [#tpu.dimension_semantics<parallel>], iteration_bounds = array<i64: 1>, scalar_prefetch = 0 : i64, scratch_operands = 0 : i64, tpu.core_type = #tpu.core_type<tc>, window_params = [{transform_indices = @transform_0, window_bounds = array<i64: 16, 784>}, {pipeline_mode = #tpu.pipeline_mode<synchronous>, transform_indices = @transform_1, window_bounds = array<i64: 784, 128>}, {pipeline_mode = #tpu.pipeline_mode<synchronous>, transform_indices = @transform_2, window_bounds = array<i64: 1, 128>}, {pipeline_mode = #tpu.pipeline_mode<synchronous>, transform_indices = @transform_3, window_bounds = array<i64: 128, 128>}, {pipeline_mode = #tpu.pipeline_mode<synchronous>, transform_indices = @transform_4, window_bounds = array<i64: 1, 128>}, {transform_indices = @transform_5, window_bounds = array<i64: 16, 10>}]} {
    %c0 = arith.constant 0 : index
    %c0_0 = arith.constant 0 : index
    %0 = vector.load %arg1[%c0, %c0_0] : memref<16x784xf32, #tpu.memory_space<vmem>>, vector<16x784xf32>
    %1 = arith.truncf %0 : vector<16x784xf32> to vector<16x784xbf16>
    %c0_1 = arith.constant 0 : index
    %c0_2 = arith.constant 0 : index
    %2 = vector.load %arg2[%c0_1, %c0_2] : memref<784x128xbf16, #tpu.memory_space<vmem>>, vector<784x128xbf16>
    %cst = arith.constant dense<0.000000e+00> : vector<16x128xf32>
    %3 = tpu.matmul %1, %2, %cst {dimension_numbers = #tpu.dot_dimension_numbers<[1], [0], [0], [1], [0, 0, 1, 1], [], []>} : vector<16x784xbf16>, vector<784x128xbf16>, vector<16x128xf32> -> vector<16x128xf32>
    %c0_3 = arith.constant 0 : index
    %c0_4 = arith.constant 0 : index
    %4 = vector.load %arg3[%c0_3, %c0_4] : memref<1x128xf32, #tpu.memory_space<vmem>>, vector<1x128xf32>
    %5 = vector.broadcast %4 : vector<1x128xf32> to vector<16x128xf32>
    %6 = arith.addf %3, %5 : vector<16x128xf32>
    %cst_5 = arith.constant 0.000000e+00 : f32
    %7 = vector.broadcast %cst_5 : f32 to vector<16x128xf32>
    %8 = arith.maximumf %6, %7 : vector<16x128xf32>
    %9 = arith.truncf %8 : vector<16x128xf32> to vector<16x128xbf16>
    %c0_6 = arith.constant 0 : index
    %c0_7 = arith.constant 0 : index
    %10 = vector.load %arg4[%c0_6, %c0_7] : memref<128x128xbf16, #tpu.memory_space<vmem>>, vector<128x128xbf16>
    %cst_8 = arith.constant dense<0.000000e+00> : vector<16x128xf32>
    %11 = tpu.matmul %9, %10, %cst_8 {dimension_numbers = #tpu.dot_dimension_numbers<[1], [0], [0], [1], [0, 0, 1, 1], [], []>} : vector<16x128xbf16>, vector<128x128xbf16>, vector<16x128xf32> -> vector<16x128xf32>
    %c0_9 = arith.constant 0 : index
    %c0_10 = arith.constant 0 : index
    %12 = vector.load %arg5[%c0_9, %c0_10] : memref<1x128xf32, #tpu.memory_space<vmem>>, vector<1x128xf32>
    %13 = vector.broadcast %12 : vector<1x128xf32> to vector<16x128xf32>
    %14 = arith.addf %11, %13 : vector<16x128xf32>
    %15 = vector.extract_strided_slice %14 {offsets = [0, 0], sizes = [16, 10], strides = [1, 1]} : vector<16x128xf32> to vector<16x10xf32>
    %c0_11 = arith.constant 0 : index
    %c0_12 = arith.constant 0 : index
    %16 = vector.load %arg6[%c0_11, %c0_12] : memref<16x10xf32, #tpu.memory_space<vmem>>, vector<16x10xf32>
    tpu.vector_store %arg6[%c0_11, %c0_12], %15 {strides = array<i32>} : memref<16x10xf32, #tpu.memory_space<vmem>>, vector<16x10xf32>,
    return
  }
  func.func @transform_0(%arg0: i32) -> (i32, i32) {
    %c0_i32 = arith.constant 0 : i32
    %c0_i32_0 = arith.constant 0 : i32
    return %arg0, %c0_i32 : i32, i32
  }
  func.func @transform_1(%arg0: i32) -> (i32, i32) {
    %c0_i32 = arith.constant 0 : i32
    %c0_i32_0 = arith.constant 0 : i32
    %c0_i32_1 = arith.constant 0 : i32
    return %c0_i32, %c0_i32_0 : i32, i32
  }
  func.func @transform_2(%arg0: i32) -> (i32, i32) {
    %c0_i32 = arith.constant 0 : i32
    %c0_i32_0 = arith.constant 0 : i32
    %c0_i32_1 = arith.constant 0 : i32
    return %c0_i32, %c0_i32_0 : i32, i32
  }
  func.func @transform_3(%arg0: i32) -> (i32, i32) {
    %c0_i32 = arith.constant 0 : i32
    %c0_i32_0 = arith.constant 0 : i32
    %c0_i32_1 = arith.constant 0 : i32
    return %c0_i32, %c0_i32_0 : i32, i32
  }
  func.func @transform_4(%arg0: i32) -> (i32, i32) {
    %c0_i32 = arith.constant 0 : i32
    %c0_i32_0 = arith.constant 0 : i32
    %c0_i32_1 = arith.constant 0 : i32
    return %c0_i32, %c0_i32_0 : i32, i32
  }
  func.func @transform_5(%arg0: i32) -> (i32, i32) {
    %c0_i32 = arith.constant 0 : i32
    %c0_i32_0 = arith.constant 0 : i32
    return %arg0, %c0_i32 : i32, i32
  }
}

</mosaic_0001>

<llo_original>
// kernel: simple_mlp_forward.1
$region0: #{simple_mlp_forward.1}
  #allocation0 [shape = 'u32[]', space=smem, size = 0x4, offset = 0x4, fixed_abs, tag = 'smem constant byte address 0x4 - core index']
  #allocation1 [shape = 'u32[144,128]{1,0:T(1,128)}', space=vmem, size = 0x12000, scoped, tag = 'internal scratch']
  %s0 = inlined_call_operand.vmem [shape: f32[2,784], index: 0, kind: input, shape index: {}]
  %s1 = inlined_call_operand.hbm [shape: bf16[784,128], index: 1, kind: input, shape index: {}]
  %s2 = inlined_call_operand.vmem [shape: f32[1,128], index: 2, kind: input, shape index: {}]
  %s3 = inlined_call_operand.vmem [shape: bf16[128,128], index: 3, kind: input, shape index: {}]
  %s4 = inlined_call_operand.vmem [shape: f32[1,128], index: 4, kind: input, shape index: {}]
  %s5 = inlined_call_operand.hbm [shape: f32[2,10], index: 5, kind: output, shape index: {}]
  %s6 = sld [smem:[#allocation0]]
  $region34: #{simple_mlp_forward.1} parent=0
    _
  %s8 = ssub.s32 1, %s6
  %s9 = scalar_select 0, %s8, %s6
  $region1: #{simple_mlp_forward.1} parent=0
    #allocation2 [shape = 'u8[200704]{0}', space=vmem, size = 0x31000, scoped, tag = 'input window, operand 1, single buffered']
    #allocation3 [shape = 's32[1]{0}', space=sflag, size = 0x4, scoped, tag = 'scoped memory for simple_mlp_forward.1']
    #allocation4 [shape = 's32[1]{0}', space=sflag, size = 0x4, scoped, tag = 'scoped memory for simple_mlp_forward.1']
    #allocation5 [shape = 'u8[8192]{0}', space=vmem, size = 0x2000, scoped, tag = 'output window, operand 0, single buffered']
    %10 = vsyncpa [#allocation3], 0
    %11 = vsyncpa [#allocation4], 0
    // Predicated region
    $region2: #{simple_mlp_forward.1} parent=1 // pred_check
      _
    $region3: #{simple_mlp_forward.1} parent=1 // pred_check_branch
      %13 = sbr.rel (0) target = $region5
    $region4: #{simple_mlp_forward.1} parent=1 // pred_region
      _
    $region5: #{simple_mlp_forward.1} parent=1 // pred_fallthru
      _
    // Predicated region
    $region6: #{simple_mlp_forward.1} parent=1 // pred_check
      _
    $region7: #{simple_mlp_forward.1} parent=1 // pred_check_branch
      %15 = sbr.rel (0) target = $region9
    $region8: #{simple_mlp_forward.1} parent=1 // pred_region
      %s17 = ssub.s32 6272, 6272
      %18 = vsyncadd [#allocation3], %s17
      %s19 = sshll.u32 [#allocation2], 4
      %s20 = int_to_ptr.vmem [resolvable:$true] %s19
      %25 = dma.hbm_to_vmem [thread:$0]  %s1, 6272, %s20, [#allocation3], 64, 64, 4
    $region9: #{simple_mlp_forward.1} parent=1 // pred_fallthru
      _
    // Predicated region
    $region10: #{simple_mlp_forward.1} parent=1 // pred_check
      _
    $region11: #{simple_mlp_forward.1} parent=1 // pred_check_branch
      %27 = sbr.rel (0) target = $region13
    $region12: #{simple_mlp_forward.1} parent=1 // pred_region
      _
    $region13: #{simple_mlp_forward.1} parent=1 // pred_fallthru
      _
    // Predicated region
    $region14: #{simple_mlp_forward.1} parent=1 // pred_check
      _
    $region15: #{simple_mlp_forward.1} parent=1 // pred_check_branch
      %29 = sbr.rel (0) target = $region17
    $region16: #{simple_mlp_forward.1} parent=1 // pred_region
      _
    $region17: #{simple_mlp_forward.1} parent=1 // pred_fallthru
      _
    // Predicated region
    $region18: #{simple_mlp_forward.1} parent=1 // pred_check
      _
    $region19: #{simple_mlp_forward.1} parent=1 // pred_check_branch
      %31 = sbr.rel (0) target = $region21
    $region20: #{simple_mlp_forward.1} parent=1 // pred_region
      _
    $region21: #{simple_mlp_forward.1} parent=1 // pred_fallthru
      _
    // Predicated region
    $region22: #{simple_mlp_forward.1} parent=1 // pred_check
      _
    $region23: #{simple_mlp_forward.1} parent=1 // pred_check_branch
      %33 = sbr.rel (0) target = $region25
    $region24: #{simple_mlp_forward.1} parent=1 // pred_region
      %34 = dma.done [#allocation3], 6272
    $region25: #{simple_mlp_forward.1} parent=1 // pred_fallthru
      _
    %v36 = vld [vmem:[%s0] sm:$0xff]
    %v37 = vld [vmem:[%s0 + $0x8] sm:$0x3f]
    %v38 = vld [vmem:[%s0 + $0xe] sm:$0xff]
    %v39 = vld [vmem:[%s0 + $0x16] sm:$0x3f]
    %v40 = vld [vmem:[%s0 + $0x1c] sm:$0xff]
    %v41 = vld [vmem:[%s0 + $0x24] sm:$0x3f]
    %v42 = vld [vmem:[%s0 + $0x2a] sm:$0xff]
    %v43 = vld [vmem:[%s0 + $0x32] sm:$0x3f]
    %v44 = vld [vmem:[%s0 + $0x38] sm:$0xff]
    %v45 = vld [vmem:[%s0 + $0x40] sm:$0x3f]
    %v46 = vld [vmem:[%s0 + $0x46] sm:$0xff]
    %v47 = vld [vmem:[%s0 + $0x4e] sm:$0x3f]
    %v48 = vld [vmem:[%s0 + $0x54] sm:$0xff]
    %v49 = vld [vmem:[%s0 + $0x5c] sm:$0x3f]
    %v50 = vld [vmem:[%s0 + $0x62] sm:$0xff]
    %v51 = vld [vmem:[%s0 + $0x6a] sm:$0x3f]
    %v68 = vcombine.low %v36, %v38
    %v69 = vcombine.high %v36, %v38
    %v70 = vcombine.low %v40, %v42
    %v71 = vcombine.high %v40, %v42
    %v73 = vunpack.c.l.s4 1983009808
    %v74 = vunpack.c.0.s8 %v73
    %v75 = vlaneseq
    %v76 = vshrl.u32 %v75, 7
    %v77 = vsub.s32 %v74, %v76
    %v78 = vrot.slane %v68, %v77
    %v80 = vunpack.c.l.s4 1983009808
    %v81 = vunpack.c.0.s8 %v80
    %v82 = vlaneseq
    %v83 = vshrl.u32 %v82, 7
    %v84 = vsub.s32 %v81, %v83
    %v85 = vrot.slane %v69, %v84
    %v87 = vunpack.c.l.s4 1983009808
    %v88 = vunpack.c.0.s8 %v87
    %v89 = vlaneseq
    %v90 = vshrl.u32 %v89, 7
    %v91 = vsub.s32 %v88, %v90
    %v92 = vrot.slane %v70, %v91
    %v94 = vunpack.c.l.s4 1983009808
    %v95 = vunpack.c.0.s8 %v94
    %v96 = vlaneseq
    %v97 = vshrl.u32 %v96, 7
    %v98 = vsub.s32 %v95, %v97
    %v99 = vrot.slane %v71, %v98
    %v100 = vcombine.low %v78, %v92
    %v101 = vcombine.high %v78, %v92
    %v102 = vcombine.low %v85, %v99
    %v103 = vcombine.high %v85, %v99
    %v104 = vcombine.low %v37, %v39
    %v105 = vcombine.high %v37, %v39
    %v106 = vcombine.low %v41, %v43
    %v107 = vcombine.high %v41, %v43
    %v109 = vunpack.c.l.s4 1983009808
    %v110 = vunpack.c.0.s8 %v109
    %v111 = vlaneseq
    %v112 = vshrl.u32 %v111, 7
    %v113 = vsub.s32 %v110, %v112
    %v114 = vrot.slane %v104, %v113
    %v116 = vunpack.c.l.s4 1983009808
    %v117 = vunpack.c.0.s8 %v116
    %v118 = vlaneseq
    %v119 = vshrl.u32 %v118, 7
    %v120 = vsub.s32 %v117, %v119
    %v121 = vrot.slane %v105, %v120
    %v123 = vunpack.c.l.s4 1983009808
    %v124 = vunpack.c.0.s8 %v123
    %v125 = vlaneseq
    %v126 = vshrl.u32 %v125, 7
    %v127 = vsub.s32 %v124, %v126
    %v128 = vrot.slane %v106, %v127
    %v130 = vunpack.c.l.s4 1983009808
    %v131 = vunpack.c.0.s8 %v130
    %v132 = vlaneseq
    %v133 = vshrl.u32 %v132, 7
    %v134 = vsub.s32 %v131, %v133
    %v135 = vrot.slane %v107, %v134
    %v136 = vcombine.low %v114, %v128
    %v137 = vcombine.high %v114, %v128
    %v138 = vcombine.low %v121, %v135
    %v139 = vcombine.low %v44, %v46
    %v140 = vcombine.high %v44, %v46
    %v141 = vcombine.low %v48, %v50
    %v142 = vcombine.high %v48, %v50
    %v144 = vunpack.c.l.s4 1983009808
    %v145 = vunpack.c.0.s8 %v144
    %v146 = vlaneseq
    %v147 = vshrl.u32 %v146, 7
    %v148 = vsub.s32 %v145, %v147
    %v149 = vrot.slane %v139, %v148
    %v151 = vunpack.c.l.s4 1983009808
    %v152 = vunpack.c.0.s8 %v151
    %v153 = vlaneseq
    %v154 = vshrl.u32 %v153, 7
    %v155 = vsub.s32 %v152, %v154
    %v156 = vrot.slane %v140, %v155
    %v158 = vunpack.c.l.s4 1983009808
    %v159 = vunpack.c.0.s8 %v158
    %v160 = vlaneseq
    %v161 = vshrl.u32 %v160, 7
    %v162 = vsub.s32 %v159, %v161
    %v163 = vrot.slane %v141, %v162
    %v165 = vunpack.c.l.s4 1983009808
    %v166 = vunpack.c.0.s8 %v165
    %v167 = vlaneseq
    %v168 = vshrl.u32 %v167, 7
    %v169 = vsub.s32 %v166, %v168
    %v170 = vrot.slane %v142, %v169
    %v171 = vcombine.low %v149, %v163
    %v172 = vcombine.high %v149, %v163
    %v173 = vcombine.low %v156, %v170
    %v174 = vcombine.high %v156, %v170
    %v175 = vcombine.low %v45, %v47
    %v176 = vcombine.high %v45, %v47
    %v177 = vcombine.low %v49, %v51
    %v178 = vcombine.high %v49, %v51
    %v180 = vunpack.c.l.s4 1983009808
    %v181 = vunpack.c.0.s8 %v180
    %v182 = vlaneseq
    %v183 = vshrl.u32 %v182, 7
    %v184 = vsub.s32 %v181, %v183
    %v185 = vrot.slane %v175, %v184
    %v187 = vunpack.c.l.s4 1983009808
    %v188 = vunpack.c.0.s8 %v187
    %v189 = vlaneseq
    %v190 = vshrl.u32 %v189, 7
    %v191 = vsub.s32 %v188, %v190
    %v192 = vrot.slane %v176, %v191
    %v194 = vunpack.c.l.s4 1983009808
    %v195 = vunpack.c.0.s8 %v194
    %v196 = vlaneseq
    %v197 = vshrl.u32 %v196, 7
    %v198 = vsub.s32 %v195, %v197
    %v199 = vrot.slane %v177, %v198
    %v201 = vunpack.c.l.s4 1983009808
    %v202 = vunpack.c.0.s8 %v201
    %v203 = vlaneseq
    %v204 = vshrl.u32 %v203, 7
    %v205 = vsub.s32 %v202, %v204
    %v206 = vrot.slane %v178, %v205
    %v207 = vcombine.low %v185, %v199
    %v208 = vcombine.high %v185, %v199
    %v209 = vcombine.low %v192, %v206
    %v224 = vpack.c.bf16 %v171, %v100
    %v225 = vpack.c.bf16 %v172, %v101
    %v226 = vpack.c.bf16 %v173, %v102
    %v227 = vpack.c.bf16 %v174, %v103
    %v228 = vpack.c.bf16 %v207, %v136
    %v229 = vpack.c.bf16 %v208, %v137
    %v230 = vpack.c.bf16 %v209, %v138
    %v231 = vld [vmem:[#allocation2] sm:$0xf]
    %v232 = vld [vmem:[#allocation2 + $0x4] sm:$0xf]
    %v233 = vld [vmem:[#allocation2 + $0x8] sm:$0xf]
    %v234 = vld [vmem:[#allocation2 + $0xc] sm:$0xf]
    %v235 = vld [vmem:[#allocation2 + $0x10] sm:$0xf]
    %v236 = vld [vmem:[#allocation2 + $0x14] sm:$0xf]
    %v237 = vld [vmem:[#allocation2 + $0x18] sm:$0xf]
    %v238 = vld [vmem:[#allocation2 + $0x1c] sm:$0xf]
    %v239 = vld [vmem:[#allocation2 + $0x20] sm:$0xf]
    %v240 = vld [vmem:[#allocation2 + $0x24] sm:$0xf]
    %v241 = vld [vmem:[#allocation2 + $0x28] sm:$0xf]
    %v242 = vld [vmem:[#allocation2 + $0x2c] sm:$0xf]
    %v243 = vld [vmem:[#allocation2 + $0x30] sm:$0xf]
    %v244 = vld [vmem:[#allocation2 + $0x34] sm:$0xf]
    %v245 = vld [vmem:[#allocation2 + $0x38] sm:$0xf]
    %v246 = vld [vmem:[#allocation2 + $0x3c] sm:$0xf]
    %v247 = vld [vmem:[#allocation2 + $0x40] sm:$0xf]
    %v248 = vld [vmem:[#allocation2 + $0x44] sm:$0xf]
    %v249 = vld [vmem:[#allocation2 + $0x48] sm:$0xf]
    %v250 = vld [vmem:[#allocation2 + $0x4c] sm:$0xf]
    %v251 = vld [vmem:[#allocation2 + $0x50] sm:$0xf]
    %v252 = vld [vmem:[#allocation2 + $0x54] sm:$0xf]
    %v253 = vld [vmem:[#allocation2 + $0x58] sm:$0xf]
    %v254 = vld [vmem:[#allocation2 + $0x5c] sm:$0xf]
    %v255 = vld [vmem:[#allocation2 + $0x60] sm:$0xf]
    %v256 = vld [vmem:[#allocation2 + $0x64] sm:$0xf]
    %v257 = vld [vmem:[#allocation2 + $0x68] sm:$0xf]
    %v258 = vld [vmem:[#allocation2 + $0x6c] sm:$0xf]
    %v259 = vld [vmem:[#allocation2 + $0x70] sm:$0xf]
    %v260 = vld [vmem:[#allocation2 + $0x74] sm:$0xf]
    %v261 = vld [vmem:[#allocation2 + $0x78] sm:$0xf]
    %v262 = vld [vmem:[#allocation2 + $0x7c] sm:$0xf]
    %v263 = vld [vmem:[#allocation2 + $0x80] sm:$0xf]
    %v264 = vld [vmem:[#allocation2 + $0x84] sm:$0xf]
    %v265 = vld [vmem:[#allocation2 + $0x88] sm:$0xf]
    %v266 = vld [vmem:[#allocation2 + $0x8c] sm:$0xf]
    %v267 = vld [vmem:[#allocation2 + $0x90] sm:$0xf]
    %v268 = vld [vmem:[#allocation2 + $0x94] sm:$0xf]
    %v269 = vld [vmem:[#allocation2 + $0x98] sm:$0xf]
    %v270 = vld [vmem:[#allocation2 + $0x9c] sm:$0xf]
    %v271 = vld [vmem:[#allocation2 + $0xa0] sm:$0xf]
    %v272 = vld [vmem:[#allocation2 + $0xa4] sm:$0xf]
    %v273 = vld [vmem:[#allocation2 + $0xa8] sm:$0xf]
    %v274 = vld [vmem:[#allocation2 + $0xac] sm:$0xf]
    %v275 = vld [vmem:[#allocation2 + $0xb0] sm:$0xf]
    %v276 = vld [vmem:[#allocation2 + $0xb4] sm:$0xf]
    %v277 = vld [vmem:[#allocation2 + $0xb8] sm:$0xf]
    %v278 = vld [vmem:[#allocation2 + $0xbc] sm:$0xf]
    %v279 = vld [vmem:[#allocation2 + $0xc0] sm:$0xf]
    %v280 = vld [vmem:[#allocation2 + $0xc4] sm:$0xf]
    %v281 = vld [vmem:[#allocation2 + $0xc8] sm:$0xf]
    %v282 = vld [vmem:[#allocation2 + $0xcc] sm:$0xf]
    %v283 = vld [vmem:[#allocation2 + $0xd0] sm:$0xf]
    %v284 = vld [vmem:[#allocation2 + $0xd4] sm:$0xf]
    %v285 = vld [vmem:[#allocation2 + $0xd8] sm:$0xf]
    %v286 = vld [vmem:[#allocation2 + $0xdc] sm:$0xf]
    %v287 = vld [vmem:[#allocation2 + $0xe0] sm:$0xf]
    %v288 = vld [vmem:[#allocation2 + $0xe4] sm:$0xf]
    %v289 = vld [vmem:[#allocation2 + $0xe8] sm:$0xf]
    %v290 = vld [vmem:[#allocation2 + $0xec] sm:$0xf]
    %v291 = vld [vmem:[#allocation2 + $0xf0] sm:$0xf]
    %v292 = vld [vmem:[#allocation2 + $0xf4] sm:$0xf]
    %v293 = vld [vmem:[#allocation2 + $0xf8] sm:$0xf]
    %v294 = vld [vmem:[#allocation2 + $0xfc] sm:$0xf]
    %v295 = vld [vmem:[#allocation2 + $0x100] sm:$0xf]
    %v296 = vld [vmem:[#allocation2 + $0x104] sm:$0xf]
    %v297 = vld [vmem:[#allocation2 + $0x108] sm:$0xf]
    %v298 = vld [vmem:[#allocation2 + $0x10c] sm:$0xf]
    %v299 = vld [vmem:[#allocation2 + $0x110] sm:$0xf]
    %v300 = vld [vmem:[#allocation2 + $0x114] sm:$0xf]
    %v301 = vld [vmem:[#allocation2 + $0x118] sm:$0xf]
    %v302 = vld [vmem:[#allocation2 + $0x11c] sm:$0xf]
    %v303 = vld [vmem:[#allocation2 + $0x120] sm:$0xf]
    %v304 = vld [vmem:[#allocation2 + $0x124] sm:$0xf]
    %v305 = vld [vmem:[#allocation2 + $0x128] sm:$0xf]
    %v306 = vld [vmem:[#allocation2 + $0x12c] sm:$0xf]
    %v307 = vld [vmem:[#allocation2 + $0x130] sm:$0xf]
    %v308 = vld [vmem:[#allocation2 + $0x134] sm:$0xf]
    %v309 = vld [vmem:[#allocation2 + $0x138] sm:$0xf]
    %v310 = vld [vmem:[#allocation2 + $0x13c] sm:$0xf]
    %v311 = vld [vmem:[#allocation2 + $0x140] sm:$0xf]
    %v312 = vld [vmem:[#allocation2 + $0x144] sm:$0xf]
    %v313 = vld [vmem:[#allocation2 + $0x148] sm:$0xf]
    %v314 = vld [vmem:[#allocation2 + $0x14c] sm:$0xf]
    %v315 = vld [vmem:[#allocation2 + $0x150] sm:$0xf]
    %v316 = vld [vmem:[#allocation2 + $0x154] sm:$0xf]
    %v317 = vld [vmem:[#allocation2 + $0x158] sm:$0xf]
    %v318 = vld [vmem:[#allocation2 + $0x15c] sm:$0xf]
    %v319 = vld [vmem:[#allocation2 + $0x160] sm:$0xf]
    %v320 = vld [vmem:[#allocation2 + $0x164] sm:$0xf]
    %v321 = vld [vmem:[#allocation2 + $0x168] sm:$0xf]
    %v322 = vld [vmem:[#allocation2 + $0x16c] sm:$0xf]
    %v323 = vld [vmem:[#allocation2 + $0x170] sm:$0xf]
    %v324 = vld [vmem:[#allocation2 + $0x174] sm:$0xf]
    %v325 = vld [vmem:[#allocation2 + $0x178] sm:$0xf]
    %v326 = vld [vmem:[#allocation2 + $0x17c] sm:$0xf]
    %v327 = vld [vmem:[#allocation2 + $0x180] sm:$0xf]
    %v328 = vld [vmem:[#allocation2 + $0x184] sm:$0xf]
    %v329 = vld [vmem:[%s2] sm:$0x1]
    %v331 = vlaneseq
    %v332 = vshrl.u32 %v331, 7
    %v333 = vsub.s32 0, %v332
    %v334 = vrot.slane %v329, %v333
    %v434 = vunpack.c.l.b16 %v231
    %v435 = vunpack.c.l.b16 %v232
    %v436 = vunpack.c.l.b16 %v233
    %v437 = vunpack.c.l.b16 %v234
    %v438 = vunpack.c.l.b16 %v235
    %v439 = vunpack.c.l.b16 %v236
    %v440 = vunpack.c.l.b16 %v237
    %v441 = vunpack.c.l.b16 %v238
    %v442 = vunpack.c.l.b16 %v239
    %v443 = vunpack.c.l.b16 %v240
    %v444 = vunpack.c.l.b16 %v241
    %v445 = vunpack.c.l.b16 %v242
    %v446 = vunpack.c.l.b16 %v243
    %v447 = vunpack.c.l.b16 %v244
    %v448 = vunpack.c.l.b16 %v245
    %v449 = vunpack.c.l.b16 %v246
    %v450 = vunpack.c.l.b16 %v247
    %v451 = vunpack.c.l.b16 %v248
    %v452 = vunpack.c.l.b16 %v249
    %v453 = vunpack.c.l.b16 %v250
    %v454 = vunpack.c.l.b16 %v251
    %v455 = vunpack.c.l.b16 %v252
    %v456 = vunpack.c.l.b16 %v253
    %v457 = vunpack.c.l.b16 %v254
    %v458 = vunpack.c.l.b16 %v255
    %v459 = vunpack.c.l.b16 %v256
    %v460 = vunpack.c.l.b16 %v257
    %v461 = vunpack.c.l.b16 %v258
    %v462 = vunpack.c.l.b16 %v259
    %v463 = vunpack.c.l.b16 %v260
    %v464 = vunpack.c.l.b16 %v261
    %v465 = vunpack.c.l.b16 %v262
    %v466 = vunpack.c.l.b16 %v263
    %v467 = vunpack.c.l.b16 %v264
    %v468 = vunpack.c.l.b16 %v265
    %v469 = vunpack.c.l.b16 %v266
    %v470 = vunpack.c.l.b16 %v267
    %v471 = vunpack.c.l.b16 %v268
    %v472 = vunpack.c.l.b16 %v269
    %v473 = vunpack.c.l.b16 %v270
    %v474 = vunpack.c.l.b16 %v271
    %v475 = vunpack.c.l.b16 %v272
    %v476 = vunpack.c.l.b16 %v273
    %v477 = vunpack.c.l.b16 %v274
    %v478 = vunpack.c.l.b16 %v275
    %v479 = vunpack.c.l.b16 %v276
    %v480 = vunpack.c.l.b16 %v277
    %v481 = vunpack.c.l.b16 %v278
    %v482 = vunpack.c.l.b16 %v279
    %v483 = vunpack.c.l.b16 %v280
    %v484 = vunpack.c.l.b16 %v281
    %v485 = vunpack.c.l.b16 %v282
    %v486 = vunpack.c.l.b16 %v283
    %v487 = vunpack.c.l.b16 %v284
    %v488 = vunpack.c.l.b16 %v285
    %v489 = vunpack.c.l.b16 %v286
    %v490 = vunpack.c.l.b16 %v287
    %v491 = vunpack.c.l.b16 %v288
    %v492 = vunpack.c.l.b16 %v289
    %v493 = vunpack.c.l.b16 %v290
    %v494 = vunpack.c.l.b16 %v291
    %v495 = vunpack.c.l.b16 %v292
    %v496 = vunpack.c.l.b16 %v293
    %v497 = vunpack.c.l.b16 %v294
    %v498 = vunpack.c.l.b16 %v295
    %v499 = vunpack.c.l.b16 %v296
    %v500 = vunpack.c.l.b16 %v297
    %v501 = vunpack.c.l.b16 %v298
    %v502 = vunpack.c.l.b16 %v299
    %v503 = vunpack.c.l.b16 %v300
    %v504 = vunpack.c.l.b16 %v301
    %v505 = vunpack.c.l.b16 %v302
    %v506 = vunpack.c.l.b16 %v303
    %v507 = vunpack.c.l.b16 %v304
    %v508 = vunpack.c.l.b16 %v305
    %v509 = vunpack.c.l.b16 %v306
    %v510 = vunpack.c.l.b16 %v307
    %v511 = vunpack.c.l.b16 %v308
    %v512 = vunpack.c.l.b16 %v309
    %v513 = vunpack.c.l.b16 %v310
    %v514 = vunpack.c.l.b16 %v311
    %v515 = vunpack.c.l.b16 %v312
    %v516 = vunpack.c.l.b16 %v313
    %v517 = vunpack.c.l.b16 %v314
    %v518 = vunpack.c.l.b16 %v315
    %v519 = vunpack.c.l.b16 %v316
    %v520 = vunpack.c.l.b16 %v317
    %v521 = vunpack.c.l.b16 %v318
    %v522 = vunpack.c.l.b16 %v319
    %v523 = vunpack.c.l.b16 %v320
    %v524 = vunpack.c.l.b16 %v321
    %v525 = vunpack.c.l.b16 %v322
    %v526 = vunpack.c.l.b16 %v323
    %v527 = vunpack.c.l.b16 %v324
    %v528 = vunpack.c.l.b16 %v325
    %v529 = vunpack.c.l.b16 %v326
    %v530 = vunpack.c.l.b16 %v327
    %v531 = vunpack.c.l.b16 %v328
    %v532 = vpack.c.b16 %v435, %v434
    %v533 = vpack.c.b16 %v437, %v436
    %v534 = vpack.c.b16 %v439, %v438
    %v535 = vpack.c.b16 %v441, %v440
    %v536 = vpack.c.b16 %v443, %v442
    %v537 = vpack.c.b16 %v445, %v444
    %v538 = vpack.c.b16 %v447, %v446
    %v539 = vpack.c.b16 %v449, %v448
    %v540 = vpack.c.b16 %v451, %v450
    %v541 = vpack.c.b16 %v453, %v452
    %v542 = vpack.c.b16 %v455, %v454
    %v543 = vpack.c.b16 %v457, %v456
    %v544 = vpack.c.b16 %v459, %v458
    %v545 = vpack.c.b16 %v461, %v460
    %v546 = vpack.c.b16 %v463, %v462
    %v547 = vpack.c.b16 %v465, %v464
    %v548 = vpack.c.b16 %v467, %v466
    %v549 = vpack.c.b16 %v469, %v468
    %v550 = vpack.c.b16 %v471, %v470
    %v551 = vpack.c.b16 %v473, %v472
    %v552 = vpack.c.b16 %v475, %v474
    %v553 = vpack.c.b16 %v477, %v476
    %v554 = vpack.c.b16 %v479, %v478
    %v555 = vpack.c.b16 %v481, %v480
    %v556 = vpack.c.b16 %v483, %v482
    %v557 = vpack.c.b16 %v485, %v484
    %v558 = vpack.c.b16 %v487, %v486
    %v559 = vpack.c.b16 %v489, %v488
    %v560 = vpack.c.b16 %v491, %v490
    %v561 = vpack.c.b16 %v493, %v492
    %v562 = vpack.c.b16 %v495, %v494
    %v563 = vpack.c.b16 %v497, %v496
    %v564 = vpack.c.b16 %v499, %v498
    %v565 = vpack.c.b16 %v501, %v500
    %v566 = vpack.c.b16 %v503, %v502
    %v567 = vpack.c.b16 %v505, %v504
    %v568 = vpack.c.b16 %v507, %v506
    %v569 = vpack.c.b16 %v509, %v508
    %v570 = vpack.c.b16 %v511, %v510
    %v571 = vpack.c.b16 %v513, %v512
    %v572 = vpack.c.b16 %v515, %v514
    %v573 = vpack.c.b16 %v517, %v516
    %v574 = vpack.c.b16 %v519, %v518
    %v575 = vpack.c.b16 %v521, %v520
    %v576 = vpack.c.b16 %v523, %v522
    %v577 = vpack.c.b16 %v525, %v524
    %v578 = vpack.c.b16 %v527, %v526
    %v579 = vpack.c.b16 %v529, %v528
    %v580 = vpack.c.b16 %v531, %v530
    %vm630 = vcmask 130048
    %v632 = vsel %vm630, %v230, 0
    %634 = vmatprep.subr.bf16.mxu0 0
    %635 = vmatpush1.bf16.msra.mxu0 %v539
    %636 = vmatprep.subr.bf16.mxu0 0
    %637 = vmatpush1.bf16.msra.mxu0 %v538
    %638 = vmatprep.subr.bf16.mxu0 0
    %639 = vmatpush1.bf16.msra.mxu0 %v537
    %640 = vmatprep.subr.bf16.mxu0 0
    %641 = vmatpush1.bf16.msra.mxu0 %v536
    %642 = vmatprep.subr.bf16.mxu0 0
    %643 = vmatpush1.bf16.msra.mxu0 %v535
    %644 = vmatprep.subr.bf16.mxu0 0
    %645 = vmatpush1.bf16.msra.mxu0 %v534
    %646 = vmatprep.subr.bf16.mxu0 0
    %647 = vmatpush1.bf16.msra.mxu0 %v533
    %648 = vmatprep.subr.bf16.mxu0 0
    %649 = vmatpush1.bf16.msra.mxu0 %v532
    %650 = vmatprep.subr.bf16.mxu0 0
    %651 = vmatpush2.bf16.msra.mxu0 %v547
    %652 = vmatprep.subr.bf16.mxu0 0
    %653 = vmatpush2.bf16.msra.mxu0 %v546
    %654 = vmatprep.subr.bf16.mxu0 0
    %655 = vmatpush2.bf16.msra.mxu0 %v545
    %656 = vmatprep.subr.bf16.mxu0 0
    %657 = vmatpush2.bf16.msra.mxu0 %v544
    %658 = vmatprep.subr.bf16.mxu0 0
    %659 = vmatpush2.bf16.msra.mxu0 %v543
    %660 = vmatprep.subr.bf16.mxu0 0
    %661 = vmatpush2.bf16.msra.mxu0 %v542
    %662 = vmatprep.subr.bf16.mxu0 0
    %663 = vmatpush2.bf16.msra.mxu0 %v541
    %664 = vmatprep.subr.bf16.mxu0 0
    %665 = vmatpush2.bf16.msra.mxu0 %v540
    %666 = vmatprep.mubr.bf16.mxu0 %v225
    %667 = vmatmul.mubr.bf16.gmra.mxu0 %v224
    %v668 = vpop.f32.mrf.mxu0
    %v669 = vadd.f32 %v334, %v668
    %v670 = vpop.f32.mrf.mxu0
    %v671 = vpop.f32.mrf.mxu0
    %v672 = vadd.f32 %v334, %v671
    %v673 = vpop.f32.mrf.mxu0
    %674 = vdwg.mxu0
    %675 = vmatprep.subr.bf16.mxu0 0
    %676 = vmatpush1.bf16.msra.mxu0 %v555
    %677 = vmatprep.subr.bf16.mxu0 0
    %678 = vmatpush1.bf16.msra.mxu0 %v554
    %679 = vmatprep.subr.bf16.mxu0 0
    %680 = vmatpush1.bf16.msra.mxu0 %v553
    %681 = vmatprep.subr.bf16.mxu0 0
    %682 = vmatpush1.bf16.msra.mxu0 %v552
    %683 = vmatprep.subr.bf16.mxu0 0
    %684 = vmatpush1.bf16.msra.mxu0 %v551
    %685 = vmatprep.subr.bf16.mxu0 0
    %686 = vmatpush1.bf16.msra.mxu0 %v550
    %687 = vmatprep.subr.bf16.mxu0 0
    %688 = vmatpush1.bf16.msra.mxu0 %v549
    %689 = vmatprep.subr.bf16.mxu0 0
    %690 = vmatpush1.bf16.msra.mxu0 %v548
    %691 = vmatprep.subr.bf16.mxu0 0
    %692 = vmatpush2.bf16.msra.mxu0 %v563
    %693 = vmatprep.subr.bf16.mxu0 0
    %694 = vmatpush2.bf16.msra.mxu0 %v562
    %695 = vmatprep.subr.bf16.mxu0 0
    %696 = vmatpush2.bf16.msra.mxu0 %v561
    %697 = vmatprep.subr.bf16.mxu0 0
    %698 = vmatpush2.bf16.msra.mxu0 %v560
    %699 = vmatprep.subr.bf16.mxu0 0
    %700 = vmatpush2.bf16.msra.mxu0 %v559
    %701 = vmatprep.subr.bf16.mxu0 0
    %702 = vmatpush2.bf16.msra.mxu0 %v558
    %703 = vmatprep.subr.bf16.mxu0 0
    %704 = vmatpush2.bf16.msra.mxu0 %v557
    %705 = vmatprep.subr.bf16.mxu0 0
    %706 = vmatpush2.bf16.msra.mxu0 %v556
    %707 = vmatprep.mubr.bf16.mxu0 %v227
    %708 = vmatmul.mubr.bf16.gmra.mxu0 %v226
    %v709 = vpop.f32.mrf.mxu0
    %v710 = vadd.f32 %v669, %v709
    %v711 = vpop.f32.mrf.mxu0
    %v712 = vpop.f32.mrf.mxu0
    %v713 = vadd.f32 %v672, %v712
    %v714 = vpop.f32.mrf.mxu0
    %715 = vdwg.mxu0
    %716 = vmatprep.subr.bf16.mxu0 0
    %717 = vmatpush1.bf16.msra.mxu0 %v571
    %718 = vmatprep.subr.bf16.mxu0 0
    %719 = vmatpush1.bf16.msra.mxu0 %v570
    %720 = vmatprep.subr.bf16.mxu0 0
    %721 = vmatpush1.bf16.msra.mxu0 %v569
    %722 = vmatprep.subr.bf16.mxu0 0
    %723 = vmatpush1.bf16.msra.mxu0 %v568
    %724 = vmatprep.subr.bf16.mxu0 0
    %725 = vmatpush1.bf16.msra.mxu0 %v567
    %726 = vmatprep.subr.bf16.mxu0 0
    %727 = vmatpush1.bf16.msra.mxu0 %v566
    %728 = vmatprep.subr.bf16.mxu0 0
    %729 = vmatpush1.bf16.msra.mxu0 %v565
    %730 = vmatprep.subr.bf16.mxu0 0
    %731 = vmatpush1.bf16.msra.mxu0 %v564
    %732 = vmatprep.subr.bf16.mxu0 0
    %733 = vmatpush2.bf16.msra.mxu0 %v579
    %734 = vmatprep.subr.bf16.mxu0 0
    %735 = vmatpush2.bf16.msra.mxu0 %v578
    %736 = vmatprep.subr.bf16.mxu0 0
    %737 = vmatpush2.bf16.msra.mxu0 %v577
    %738 = vmatprep.subr.bf16.mxu0 0
    %739 = vmatpush2.bf16.msra.mxu0 %v576
    %740 = vmatprep.subr.bf16.mxu0 0
    %741 = vmatpush2.bf16.msra.mxu0 %v575
    %742 = vmatprep.subr.bf16.mxu0 0
    %743 = vmatpush2.bf16.msra.mxu0 %v574
    %744 = vmatprep.subr.bf16.mxu0 0
    %745 = vmatpush2.bf16.msra.mxu0 %v573
    %746 = vmatprep.subr.bf16.mxu0 0
    %747 = vmatpush2.bf16.msra.mxu0 %v572
    %748 = vmatprep.mubr.bf16.mxu0 %v229
    %749 = vmatmul.mubr.bf16.gmra.mxu0 %v228
    %v750 = vpop.f32.mrf.mxu0
    %v751 = vadd.f32 %v710, %v750
    %v752 = vpop.f32.mrf.mxu0
    %v753 = vpop.f32.mrf.mxu0
    %v754 = vadd.f32 %v713, %v753
    %v755 = vpop.f32.mrf.mxu0
    %756 = vdwg.mxu0
    %757 = vmatprep.subr.bf16.mxu0 0
    %758 = vmatpush1.bf16.msra.mxu0 0
    %759 = vmatprep.subr.bf16.mxu0 0
    %760 = vmatpush1.bf16.msra.mxu0 0
    %761 = vmatprep.subr.bf16.mxu0 0
    %762 = vmatpush1.bf16.msra.mxu0 0
    %763 = vmatprep.subr.bf16.mxu0 0
    %764 = vmatpush1.bf16.msra.mxu0 0
    %765 = vmatprep.subr.bf16.mxu0 0
    %766 = vmatpush1.bf16.msra.mxu0 0
    %767 = vmatprep.subr.bf16.mxu0 0
    %768 = vmatpush1.bf16.msra.mxu0 0
    %769 = vmatprep.subr.bf16.mxu0 0
    %770 = vmatpush1.bf16.msra.mxu0 0
    %771 = vmatprep.subr.bf16.mxu0 0
    %772 = vmatpush1.bf16.msra.mxu0 %v580
    %773 = vmatprep.subr.bf16.mxu0 0
    %774 = vmatpush2.bf16.msra.mxu0 0
    %775 = vmatprep.subr.bf16.mxu0 0
    %776 = vmatpush2.bf16.msra.mxu0 0
    %777 = vmatprep.subr.bf16.mxu0 0
    %778 = vmatpush2.bf16.msra.mxu0 0
    %779 = vmatprep.subr.bf16.mxu0 0
    %780 = vmatpush2.bf16.msra.mxu0 0
    %781 = vmatprep.subr.bf16.mxu0 0
    %782 = vmatpush2.bf16.msra.mxu0 0
    %783 = vmatprep.subr.bf16.mxu0 0
    %784 = vmatpush2.bf16.msra.mxu0 0
    %785 = vmatprep.subr.bf16.mxu0 0
    %786 = vmatpush2.bf16.msra.mxu0 0
    %787 = vmatprep.subr.bf16.mxu0 0
    %788 = vmatpush2.bf16.msra.mxu0 0
    %789 = vmatprep.mubr.bf16.mxu0 0
    %790 = vmatmul.mubr.bf16.gmra.mxu0 %v632
    %v791 = vpop.f32.mrf.mxu0
    %v792 = vadd.f32 %v751, %v791
    %v793 = vpop.f32.mrf.mxu0
    %v794 = vpop.f32.mrf.mxu0
    %v795 = vadd.f32 %v754, %v794
    %v796 = vpop.f32.mrf.mxu0
    %797 = vdwg.mxu0
    %v798 = vmax.f32 %v792, 0.0
    %v799 = vmax.f32 %v795, 0.0
    %v800 = vpack.c.bf16 %v799, %v798
    %v801 = vld [vmem:[%s3] sm:$0xf]
    %v802 = vld [vmem:[%s3 + $0x4] sm:$0xf]
    %v803 = vld [vmem:[%s3 + $0x8] sm:$0xf]
    %v804 = vld [vmem:[%s3 + $0xc] sm:$0xf]
    %v805 = vld [vmem:[%s3 + $0x10] sm:$0xf]
    %v806 = vld [vmem:[%s3 + $0x14] sm:$0xf]
    %v807 = vld [vmem:[%s3 + $0x18] sm:$0xf]
    %v808 = vld [vmem:[%s3 + $0x1c] sm:$0xf]
    %v809 = vld [vmem:[%s3 + $0x20] sm:$0xf]
    %v810 = vld [vmem:[%s3 + $0x24] sm:$0xf]
    %v811 = vld [vmem:[%s3 + $0x28] sm:$0xf]
    %v812 = vld [vmem:[%s3 + $0x2c] sm:$0xf]
    %v813 = vld [vmem:[%s3 + $0x30] sm:$0xf]
    %v814 = vld [vmem:[%s3 + $0x34] sm:$0xf]
    %v815 = vld [vmem:[%s3 + $0x38] sm:$0xf]
    %v816 = vld [vmem:[%s3 + $0x3c] sm:$0xf]
    %v817 = vld [vmem:[%s4] sm:$0x1]
    %v819 = vlaneseq
    %v820 = vshrl.u32 %v819, 7
    %v821 = vsub.s32 0, %v820
    %v822 = vrot.slane %v817, %v821
    %v840 = vunpack.c.l.b16 %v801
    %v841 = vunpack.c.l.b16 %v802
    %v842 = vunpack.c.l.b16 %v803
    %v843 = vunpack.c.l.b16 %v804
    %v844 = vunpack.c.l.b16 %v805
    %v845 = vunpack.c.l.b16 %v806
    %v846 = vunpack.c.l.b16 %v807
    %v847 = vunpack.c.l.b16 %v808
    %v848 = vunpack.c.l.b16 %v809
    %v849 = vunpack.c.l.b16 %v810
    %v850 = vunpack.c.l.b16 %v811
    %v851 = vunpack.c.l.b16 %v812
    %v852 = vunpack.c.l.b16 %v813
    %v853 = vunpack.c.l.b16 %v814
    %v854 = vunpack.c.l.b16 %v815
    %v855 = vunpack.c.l.b16 %v816
    %v856 = vpack.c.b16 %v841, %v840
    %v857 = vpack.c.b16 %v843, %v842
    %v858 = vpack.c.b16 %v845, %v844
    %v859 = vpack.c.b16 %v847, %v846
    %v860 = vpack.c.b16 %v849, %v848
    %v861 = vpack.c.b16 %v851, %v850
    %v862 = vpack.c.b16 %v853, %v852
    %v863 = vpack.c.b16 %v855, %v854
    %872 = vmatprep.subr.bf16.mxu0 0
    %873 = vmatpush1.bf16.msra.mxu0 %v863
    %874 = vmatprep.subr.bf16.mxu0 0
    %875 = vmatpush1.bf16.msra.mxu0 %v862
    %876 = vmatprep.subr.bf16.mxu0 0
    %877 = vmatpush1.bf16.msra.mxu0 %v861
    %878 = vmatprep.subr.bf16.mxu0 0
    %879 = vmatpush1.bf16.msra.mxu0 %v860
    %880 = vmatprep.subr.bf16.mxu0 0
    %881 = vmatpush1.bf16.msra.mxu0 %v859
    %882 = vmatprep.subr.bf16.mxu0 0
    %883 = vmatpush1.bf16.msra.mxu0 %v858
    %884 = vmatprep.subr.bf16.mxu0 0
    %885 = vmatpush1.bf16.msra.mxu0 %v857
    %886 = vmatprep.subr.bf16.mxu0 0
    %887 = vmatpush1.bf16.msra.mxu0 %v856
    %888 = vmatprep.subr.bf16.mxu0 0
    %889 = vmatpush2.bf16.msra.mxu0 0
    %890 = vmatprep.subr.bf16.mxu0 0
    %891 = vmatpush2.bf16.msra.mxu0 0
    %892 = vmatprep.subr.bf16.mxu0 0
    %893 = vmatpush2.bf16.msra.mxu0 0
    %894 = vmatprep.subr.bf16.mxu0 0
    %895 = vmatpush2.bf16.msra.mxu0 0
    %896 = vmatprep.subr.bf16.mxu0 0
    %897 = vmatpush2.bf16.msra.mxu0 0
    %898 = vmatprep.subr.bf16.mxu0 0
    %899 = vmatpush2.bf16.msra.mxu0 0
    %900 = vmatprep.subr.bf16.mxu0 0
    %901 = vmatpush2.bf16.msra.mxu0 0
    %902 = vmatprep.subr.bf16.mxu0 0
    %903 = vmatpush2.bf16.msra.mxu0 0
    %904 = vmatprep.mubr.bf16.mxu0 0
    %905 = vmatmul.mubr.bf16.gmra.mxu0 %v800
    %v906 = vpop.f32.mrf.mxu0
    %v907 = vadd.f32 %v822, %v906
    %v908 = vpop.f32.mrf.mxu0
    %v909 = vpop.f32.mrf.mxu0
    %v910 = vadd.f32 %v822, %v909
    %v911 = vpop.f32.mrf.mxu0
    %912 = vdwg.mxu0
    %vm913 = vcmask 80896
    %914 = vst.msk [vmem:[#allocation5] sm:$0xff] %vm913, %v907
    %915 = vst.msk [vmem:[#allocation5 + $0x8] sm:$0xff] %vm913, %v910
    // Predicated region
    $region26: #{simple_mlp_forward.1} parent=1 // pred_check
      _
    $region27: #{simple_mlp_forward.1} parent=1 // pred_check_branch
      %917 = sbr.rel (0) target = $region29
    $region28: #{simple_mlp_forward.1} parent=1 // pred_region
      %s919 = ssub.s32 256, 32
      %920 = vsyncadd [#allocation4], %s919
      %s921 = sshll.u32 [#allocation5], 4
      %s922 = int_to_ptr.vmem [resolvable:$true] %s921
      %927 = dma.vmem_to_hbm [thread:$0]  %s922, 32, %s5, [#allocation4], 32, 32, 2
    $region29: #{simple_mlp_forward.1} parent=1 // pred_fallthru
      _
    // Predicated region
    $region30: #{simple_mlp_forward.1} parent=1 // pred_check
      _
    $region31: #{simple_mlp_forward.1} parent=1 // pred_check_branch
      %929 = sbr.rel (0) target = $region33
    $region32: #{simple_mlp_forward.1} parent=1 // pred_region
      %930 = dma.done [#allocation4], 256
    $region33: #{simple_mlp_forward.1} parent=1 // pred_fallthru
      _
    %931 = vsyncpa [#allocation3], 1
    %932 = vsyncpa [#allocation4], 1

</llo_original>
